<compile_context>
chip_gen: v6e
topology: v6e:2x2x1
jax: 0.10.0
libtpu: 0.0.40
codegen_flags: <defaults>
</compile_context>

<pallas_src>
import functools

import jax
import jax.numpy as jnp
from jax.experimental import pallas as pl
from jax.experimental.pallas import tpu as pltpu

LANE = 128


def _round_up(n, m):
    return (n + m - 1) // m * m


def _qnetwork_kernel(x_ref, w1_ref, b1_ref, w2_ref, b2_ref, w3_ref, b3_ref,
                     out_ref, *, matmul_dtype):
    """One batch tile of the fused 3-layer MLP (weights already in matmul dtype)."""
    x = x_ref[...]
    if matmul_dtype != jnp.float32:
        x = x.astype(matmul_dtype)

    # fc1 + ReLU (f32 accumulation on MXU, f32 bias/ReLU on VPU)
    h1 = jnp.dot(x, w1_ref[...], preferred_element_type=jnp.float32)
    h1 = jnp.maximum(h1 + b1_ref[...], 0.0)
    if matmul_dtype != jnp.float32:
        h1 = h1.astype(matmul_dtype)

    # fc2 + ReLU
    h2 = jnp.dot(h1, w2_ref[...], preferred_element_type=jnp.float32)
    h2 = jnp.maximum(h2 + b2_ref[...], 0.0)
    if matmul_dtype != jnp.float32:
        h2 = h2.astype(matmul_dtype)

    # fc3 (no activation). Output block last dim == full action dim (unpadded).
    out = jnp.dot(h2, w3_ref[...], preferred_element_type=jnp.float32)
    out_ref[...] = (out + b3_ref[...]).astype(out_ref.dtype)


@functools.partial(jax.jit,
                   static_argnames=("block_batch", "use_bf16", "out_dtype"))
def qnetwork_forward(x, params, *, block_batch=2048, use_bf16=False,
                     out_dtype=jnp.float32):
    """x: (B, state_size) float32. params: w1,b1,w2,b2,w3,b3 in (in, out) layout."""
    w1, b1, w2, b2, w3, b3 = (params[k] for k in ("w1", "b1", "w2", "b2", "w3", "b3"))

    # Accept both (1, fan_out) and nn.Linear-style (fan_out,) biases.
    b1 = jnp.reshape(b1, (1, -1)).astype(jnp.float32)
    b2 = jnp.reshape(b2, (1, -1)).astype(jnp.float32)
    b3 = jnp.reshape(b3, (1, -1)).astype(jnp.float32)

    B, S = x.shape
    H = w1.shape[1]
    A = w3.shape[1]

    # Zero-pad hidden dim to a full 128-lane multiple: full-lane vregs for the
    # h1/h2 elementwise work and K=N=128 MXU tiles. Numerics are unchanged.
    h_pad = _round_up(H, LANE)
    if h_pad != H:
        dh = h_pad - H
        w1 = jnp.pad(w1, ((0, 0), (0, dh)))
        b1 = jnp.pad(b1, ((0, 0), (0, dh)))
        w2 = jnp.pad(w2, ((0, dh), (0, dh)))
        b2 = jnp.pad(b2, ((0, 0), (0, dh)))
        w3 = jnp.pad(w3, ((0, dh), (0, 0)))

    matmul_dtype = jnp.bfloat16 if use_bf16 else jnp.float32
    if use_bf16:
        # Loop-invariant weight cast done once here (not per grid step in-kernel);
        # also halves weight VMEM residency.
        w1 = w1.astype(jnp.bfloat16)
        w2 = w2.astype(jnp.bfloat16)
        w3 = w3.astype(jnp.bfloat16)

    # Batch tile: as large as block_batch allows (amortizes ~0.35us/step grid
    # overhead) but never fewer than 2 tiles for B > 8, so the "parallel" grid
    # axis shards across both TensorCores on v7x.
    tb = max(8, min(block_batch, _round_up(pl.cdiv(B, 2), 8)))
    num_tiles = pl.cdiv(B, tb)

    # x / out tiled along batch; weights & biases VMEM-resident (constant maps).
    x_spec = pl.BlockSpec((tb, S), lambda i: (i, 0))
    w1_spec = pl.BlockSpec((S, h_pad), lambda i: (0, 0))
    b1_spec = pl.BlockSpec((1, h_pad), lambda i: (0, 0))
    w2_spec = pl.BlockSpec((h_pad, h_pad), lambda i: (0, 0))
    b2_spec = pl.BlockSpec((1, h_pad), lambda i: (0, 0))
    w3_spec = pl.BlockSpec((h_pad, A), lambda i: (0, 0))
    b3_spec = pl.BlockSpec((1, A), lambda i: (0, 0))
    out_spec = pl.BlockSpec((tb, A), lambda i: (i, 0))

    kernel = functools.partial(_qnetwork_kernel, matmul_dtype=matmul_dtype)

    out = pl.pallas_call(
        kernel,
        out_shape=jax.ShapeDtypeStruct((B, A), out_dtype),
        grid=(num_tiles,),
        in_specs=[x_spec, w1_spec, b1_spec, w2_spec, b2_spec, w3_spec, b3_spec],
        out_specs=out_spec,
        compiler_params=pltpu.CompilerParams(
            dimension_semantics=("parallel",),
            # Tiny footprint (weights ~70 KiB, double-buffered x/out well under
            # 1 MiB at tb=2048); explicit limit keeps large block_batch safe on
            # v5e's 16 MiB scoped-VMEM default.
            vmem_limit_bytes=32 * 1024 * 1024,
        ),
    )(x, w1, b1, w2, b2, w3, b3)

    return out


def init_params(key, state_size, action_size, hidden_size=64):
    """Deterministic init mirroring nn.Linear's U(-1/sqrt(fan_in), 1/sqrt(fan_in))."""
    ks = jax.random.split(key, 6)

    def linear(kw, kb, fan_in, fan_out):
        bound = 1.0 / jnp.sqrt(jnp.float32(fan_in))
        w = jax.random.uniform(kw, (fan_in, fan_out), jnp.float32, -bound, bound)
        b = jax.random.uniform(kb, (1, fan_out), jnp.float32, -bound, bound)
        return w, b

    w1, b1 = linear(ks[0], ks[1], state_size, hidden_size)
    w2, b2 = linear(ks[2], ks[3], hidden_size, hidden_size)
    w3, b3 = linear(ks[4], ks[5], hidden_size, action_size)
    return {"w1": w1, "b1": b1, "w2": w2, "b2": b2, "w3": w3, "b3": b3}


def qnetwork_ref(x, p):
    b1 = jnp.reshape(p["b1"], (1, -1))
    b2 = jnp.reshape(p["b2"], (1, -1))
    b3 = jnp.reshape(p["b3"], (1, -1))
    h1 = jnp.maximum(x @ p["w1"] + b1, 0.0)
    h2 = jnp.maximum(h1 @ p["w2"] + b2, 0.0)
    return h2 @ p["w3"] + b3


if __name__ == "__main__":
    state_size, action_size, hidden_size = 16, 8, 64

    key = jax.random.PRNGKey(0)
    kx, kx2, kx3, kp = jax.random.split(key, 4)
    params = init_params(kp, state_size, action_size, hidden_size)

    # Case 1: tiny batch (single tile), f32 — tight check.
    x_small = jax.random.normal(kx, (8, state_size), jnp.float32)
    out_small = jax.block_until_ready(qnetwork_forward(x_small, params))
    ref_small = qnetwork_ref(x_small, params)
    assert out_small.shape == (8, action_size)
    assert jnp.allclose(out_small, ref_small, atol=1e-4, rtol=1e-4)

    # Case 2: multi-tile batch grid (2 tiles), f32 — tight check.
    x_big = jax.random.normal(kx2, (256, state_size), jnp.float32)
    out_big = jax.block_until_ready(qnetwork_forward(x_big, params, block_batch=128))
    ref_big = qnetwork_ref(x_big, params)
    assert out_big.shape == (256, action_size)
    assert jnp.allclose(out_big, ref_big, atol=1e-4, rtol=1e-4)

    # Case 3: batch not a multiple of the tile (partial last tile) — tight check.
    x_ragged = jax.random.normal(kx3, (100, state_size), jnp.float32)
    out_ragged = jax.block_until_ready(
        qnetwork_forward(x_ragged, params, block_batch=128))
    ref_ragged = qnetwork_ref(x_ragged, params)
    assert out_ragged.shape == (100, action_size)
    assert jnp.allclose(out_ragged, ref_ragged, atol=1e-4, rtol=1e-4)

    # Case 4: flat nn.Linear-style biases are accepted by the wrapper.
    params_flat = dict(params)
    for k in ("b1", "b2", "b3"):
        params_flat[k] = params[k].reshape(-1)
    out_flat = jax.block_until_ready(qnetwork_forward(x_small, params_flat))
    assert jnp.allclose(out_flat, ref_small, atol=1e-4, rtol=1e-4)

    # Case 5: bf16 matmul operands (f32 accumulation / elementwise) — loose check.
    out_bf16 = jax.block_until_ready(
        qnetwork_forward(x_big, params, block_batch=128, use_bf16=True))
    assert out_bf16.shape == (256, action_size)
    assert jnp.allclose(out_bf16, ref_big, atol=5e-2, rtol=5e-2)

    # Case 6: bf16 output dtype (halved writeback) — loose check.
    out_bf16_o = jax.block_until_ready(
        qnetwork_forward(x_big, params, block_batch=128, use_bf16=True,
                         out_dtype=jnp.bfloat16))
    assert out_bf16_o.dtype == jnp.bfloat16
    assert jnp.allclose(out_bf16_o.astype(jnp.float32), ref_big,
                        atol=1e-1, rtol=1e-1)

    print("KERNEL_OK")
</pallas_src>

<mosaic_0001>
module attributes {stable_mosaic.version = 11 : i64} {
  func.func @_qnetwork_kernel(%arg0: i32, %arg1: memref<8x16xf32, #tpu.memory_space<vmem>>, %arg2: memref<16x128xf32, #tpu.memory_space<vmem>>, %arg3: memref<1x128xf32, #tpu.memory_space<vmem>>, %arg4: memref<128x128xf32, #tpu.memory_space<vmem>>, %arg5: memref<1x128xf32, #tpu.memory_space<vmem>>, %arg6: memref<128x8xf32, #tpu.memory_space<vmem>>, %arg7: memref<1x8xf32, #tpu.memory_space<vmem>>, %arg8: memref<8x8xf32, #tpu.memory_space<vmem>>) attributes {dimension_semantics = [#tpu.dimension_semantics<parallel>], iteration_bounds = array<i64: 1>, scalar_prefetch = 0 : i64, scratch_operands = 0 : i64, tpu.core_type = #tpu.core_type<tc>, window_params = [{transform_indices = @transform_0, window_bounds = array<i64: 8, 16>}, {pipeline_mode = #tpu.pipeline_mode<synchronous>, transform_indices = @transform_1, window_bounds = array<i64: 16, 128>}, {pipeline_mode = #tpu.pipeline_mode<synchronous>, transform_indices = @transform_2, window_bounds = array<i64: 1, 128>}, {pipeline_mode = #tpu.pipeline_mode<synchronous>, transform_indices = @transform_3, window_bounds = array<i64: 128, 128>}, {pipeline_mode = #tpu.pipeline_mode<synchronous>, transform_indices = @transform_4, window_bounds = array<i64: 1, 128>}, {pipeline_mode = #tpu.pipeline_mode<synchronous>, transform_indices = @transform_5, window_bounds = array<i64: 128, 8>}, {pipeline_mode = #tpu.pipeline_mode<synchronous>, transform_indices = @transform_6, window_bounds = array<i64: 1, 8>}, {transform_indices = @transform_7, window_bounds = array<i64: 8, 8>}]} {
    %c0 = arith.constant 0 : index
    %c0_0 = arith.constant 0 : index
    %0 = vector.load %arg1[%c0, %c0_0] : memref<8x16xf32, #tpu.memory_space<vmem>>, vector<8x16xf32>
    %c0_1 = arith.constant 0 : index
    %c0_2 = arith.constant 0 : index
    %1 = vector.load %arg2[%c0_1, %c0_2] : memref<16x128xf32, #tpu.memory_space<vmem>>, vector<16x128xf32>
    %cst = arith.constant dense<0.000000e+00> : vector<8x128xf32>
    %2 = tpu.matmul %0, %1, %cst {dimension_numbers = #tpu.dot_dimension_numbers<[1], [0], [0], [1], [0, 0, 1, 1], [], []>} : vector<8x16xf32>, vector<16x128xf32>, vector<8x128xf32> -> vector<8x128xf32>
    %c0_3 = arith.constant 0 : index
    %c0_4 = arith.constant 0 : index
    %3 = vector.load %arg3[%c0_3, %c0_4] : memref<1x128xf32, #tpu.memory_space<vmem>>, vector<1x128xf32>
    %4 = vector.broadcast %3 : vector<1x128xf32> to vector<8x128xf32>
    %5 = arith.addf %2, %4 : vector<8x128xf32>
    %cst_5 = arith.constant 0.000000e+00 : f32
    %6 = vector.broadcast %cst_5 : f32 to vector<8x128xf32>
    %7 = arith.maximumf %5, %6 : vector<8x128xf32>
    %c0_6 = arith.constant 0 : index
    %c0_7 = arith.constant 0 : index
    %8 = vector.load %arg4[%c0_6, %c0_7] : memref<128x128xf32, #tpu.memory_space<vmem>>, vector<128x128xf32>
    %cst_8 = arith.constant dense<0.000000e+00> : vector<8x128xf32>
    %9 = tpu.matmul %7, %8, %cst_8 {dimension_numbers = #tpu.dot_dimension_numbers<[1], [0], [0], [1], [0, 0, 1, 1], [], []>} : vector<8x128xf32>, vector<128x128xf32>, vector<8x128xf32> -> vector<8x128xf32>
    %c0_9 = arith.constant 0 : index
    %c0_10 = arith.constant 0 : index
    %10 = vector.load %arg5[%c0_9, %c0_10] : memref<1x128xf32, #tpu.memory_space<vmem>>, vector<1x128xf32>
    %11 = vector.broadcast %10 : vector<1x128xf32> to vector<8x128xf32>
    %12 = arith.addf %9, %11 : vector<8x128xf32>
    %cst_11 = arith.constant 0.000000e+00 : f32
    %13 = vector.broadcast %cst_11 : f32 to vector<8x128xf32>
    %14 = arith.maximumf %12, %13 : vector<8x128xf32>
    %c0_12 = arith.constant 0 : index
    %c0_13 = arith.constant 0 : index
    %15 = vector.load %arg6[%c0_12, %c0_13] : memref<128x8xf32, #tpu.memory_space<vmem>>, vector<128x8xf32>
    %cst_14 = arith.constant dense<0.000000e+00> : vector<8x8xf32>
    %16 = tpu.matmul %14, %15, %cst_14 {dimension_numbers = #tpu.dot_dimension_numbers<[1], [0], [0], [1], [0, 0, 1, 1], [], []>} : vector<8x128xf32>, vector<128x8xf32>, vector<8x8xf32> -> vector<8x8xf32>
    %c0_15 = arith.constant 0 : index
    %c0_16 = arith.constant 0 : index
    %17 = vector.load %arg7[%c0_15, %c0_16] : memref<1x8xf32, #tpu.memory_space<vmem>>, vector<1x8xf32>
    %18 = vector.broadcast %17 : vector<1x8xf32> to vector<8x8xf32>
    %19 = arith.addf %16, %18 : vector<8x8xf32>
    %c0_17 = arith.constant 0 : index
    %c0_18 = arith.constant 0 : index
    %20 = vector.load %arg8[%c0_17, %c0_18] : memref<8x8xf32, #tpu.memory_space<vmem>>, vector<8x8xf32>
    tpu.vector_store %arg8[%c0_17, %c0_18], %19 {strides = array<i32>} : memref<8x8xf32, #tpu.memory_space<vmem>>, vector<8x8xf32>,
    return
  }
  func.func @transform_0(%arg0: i32) -> (i32, i32) {
    %c0_i32 = arith.constant 0 : i32
    %c0_i32_0 = arith.constant 0 : i32
    return %arg0, %c0_i32 : i32, i32
  }
  func.func @transform_1(%arg0: i32) -> (i32, i32) {
    %c0_i32 = arith.constant 0 : i32
    %c0_i32_0 = arith.constant 0 : i32
    %c0_i32_1 = arith.constant 0 : i32
    return %c0_i32, %c0_i32_0 : i32, i32
  }
  func.func @transform_2(%arg0: i32) -> (i32, i32) {
    %c0_i32 = arith.constant 0 : i32
    %c0_i32_0 = arith.constant 0 : i32
    %c0_i32_1 = arith.constant 0 : i32
    return %c0_i32, %c0_i32_0 : i32, i32
  }
  func.func @transform_3(%arg0: i32) -> (i32, i32) {
    %c0_i32 = arith.constant 0 : i32
    %c0_i32_0 = arith.constant 0 : i32
    %c0_i32_1 = arith.constant 0 : i32
    return %c0_i32, %c0_i32_0 : i32, i32
  }
  func.func @transform_4(%arg0: i32) -> (i32, i32) {
    %c0_i32 = arith.constant 0 : i32
    %c0_i32_0 = arith.constant 0 : i32
    %c0_i32_1 = arith.constant 0 : i32
    return %c0_i32, %c0_i32_0 : i32, i32
  }
  func.func @transform_5(%arg0: i32) -> (i32, i32) {
    %c0_i32 = arith.constant 0 : i32
    %c0_i32_0 = arith.constant 0 : i32
    %c0_i32_1 = arith.constant 0 : i32
    return %c0_i32, %c0_i32_0 : i32, i32
  }
  func.func @transform_6(%arg0: i32) -> (i32, i32) {
    %c0_i32 = arith.constant 0 : i32
    %c0_i32_0 = arith.constant 0 : i32
    %c0_i32_1 = arith.constant 0 : i32
    return %c0_i32, %c0_i32_0 : i32, i32
  }
  func.func @transform_7(%arg0: i32) -> (i32, i32) {
    %c0_i32 = arith.constant 0 : i32
    %c0_i32_0 = arith.constant 0 : i32
    return %arg0, %c0_i32 : i32, i32
  }
}

</mosaic_0001>

<llo_original>
// kernel: qnetwork_forward.1
$region0: #{qnetwork_forward.1}
  #allocation0 [shape = 'u32[]', space=smem, size = 0x4, offset = 0x4, fixed_abs, tag = 'smem constant byte address 0x4 - core index']
  #allocation1 [shape = 'u32[144,128]{1,0:T(1,128)}', space=vmem, size = 0x12000, scoped, tag = 'internal scratch']
  %s0 = inlined_call_operand.vmem [shape: f32[8,16], index: 0, kind: input, shape index: {}]
  %s1 = inlined_call_operand.vmem [shape: f32[16,128], index: 1, kind: input, shape index: {}]
  %s2 = inlined_call_operand.vmem [shape: f32[1,128], index: 2, kind: input, shape index: {}]
  %s3 = inlined_call_operand.vmem [shape: f32[128,128], index: 3, kind: input, shape index: {}]
  %s4 = inlined_call_operand.vmem [shape: f32[1,128], index: 4, kind: input, shape index: {}]
  %s5 = inlined_call_operand.vmem [shape: f32[128,8], index: 5, kind: input, shape index: {}]
  %s6 = inlined_call_operand.vmem [shape: f32[1,8], index: 6, kind: input, shape index: {}]
  %s7 = inlined_call_operand.hbm [shape: f32[8,8], index: 7, kind: output, shape index: {}]
  %s8 = sld [smem:[#allocation0]]
  $region38: #{qnetwork_forward.1} parent=0
    _
  %s10 = ssub.s32 1, %s8
  %s11 = scalar_select 0, %s10, %s8
  $region1: #{qnetwork_forward.1} parent=0
    #allocation2 [shape = 'u8[4096]{0}', space=vmem, size = 0x1000, scoped, tag = 'output window, operand 0, single buffered']
    #allocation3 [shape = 's32[1]{0}', space=sflag, size = 0x4, scoped, tag = 'scoped memory for qnetwork_forward.1']
    %12 = vsyncpa [#allocation3], 0
    // Predicated region
    $region2: #{qnetwork_forward.1} parent=1 // pred_check
      _
    $region3: #{qnetwork_forward.1} parent=1 // pred_check_branch
      %14 = sbr.rel (0) target = $region5
    $region4: #{qnetwork_forward.1} parent=1 // pred_region
      _
    $region5: #{qnetwork_forward.1} parent=1 // pred_fallthru
      _
    // Predicated region
    $region6: #{qnetwork_forward.1} parent=1 // pred_check
      _
    $region7: #{qnetwork_forward.1} parent=1 // pred_check_branch
      %16 = sbr.rel (0) target = $region9
    $region8: #{qnetwork_forward.1} parent=1 // pred_region
      _
    $region9: #{qnetwork_forward.1} parent=1 // pred_fallthru
      _
    // Predicated region
    $region10: #{qnetwork_forward.1} parent=1 // pred_check
      _
    $region11: #{qnetwork_forward.1} parent=1 // pred_check_branch
      %18 = sbr.rel (0) target = $region13
    $region12: #{qnetwork_forward.1} parent=1 // pred_region
      _
    $region13: #{qnetwork_forward.1} parent=1 // pred_fallthru
      _
    // Predicated region
    $region14: #{qnetwork_forward.1} parent=1 // pred_check
      _
    $region15: #{qnetwork_forward.1} parent=1 // pred_check_branch
      %20 = sbr.rel (0) target = $region17
    $region16: #{qnetwork_forward.1} parent=1 // pred_region
      _
    $region17: #{qnetwork_forward.1} parent=1 // pred_fallthru
      _
    // Predicated region
    $region18: #{qnetwork_forward.1} parent=1 // pred_check
      _
    $region19: #{qnetwork_forward.1} parent=1 // pred_check_branch
      %22 = sbr.rel (0) target = $region21
    $region20: #{qnetwork_forward.1} parent=1 // pred_region
      _
    $region21: #{qnetwork_forward.1} parent=1 // pred_fallthru
      _
    // Predicated region
    $region22: #{qnetwork_forward.1} parent=1 // pred_check
      _
    $region23: #{qnetwork_forward.1} parent=1 // pred_check_branch
      %24 = sbr.rel (0) target = $region25
    $region24: #{qnetwork_forward.1} parent=1 // pred_region
      _
    $region25: #{qnetwork_forward.1} parent=1 // pred_fallthru
      _
    // Predicated region
    $region26: #{qnetwork_forward.1} parent=1 // pred_check
      _
    $region27: #{qnetwork_forward.1} parent=1 // pred_check_branch
      %26 = sbr.rel (0) target = $region29
    $region28: #{qnetwork_forward.1} parent=1 // pred_region
      _
    $region29: #{qnetwork_forward.1} parent=1 // pred_fallthru
      _
    %v27 = vld [vmem:[%s0] sm:$0xff]
    %v28 = vld [vmem:[%s1] sm:$0xff]
    %v29 = vld [vmem:[%s1 + $0x8] sm:$0xff]
    %v30 = vld [vmem:[%s2] sm:$0x1]
    %v32 = vlaneseq
    %v33 = vshrl.u32 %v32, 7
    %v34 = vsub.s32 0, %v33
    %v35 = vrot.slane %v30, %v34
    %vm37 = vcmask 130048
    %v39 = vsel %vm37, %v27, 0
    %41 = vmatprep.subr.mxu0 0.0
    %42 = vmatpush1.msra.mxu0 0.0
    %43 = vmatprep.subr.mxu0 0.0
    %44 = vmatpush1.msra.mxu0 0.0
    %45 = vmatprep.subr.mxu0 0.0
    %46 = vmatpush1.msra.mxu0 0.0
    %47 = vmatprep.subr.mxu0 0.0
    %48 = vmatpush1.msra.mxu0 0.0
    %49 = vmatprep.subr.mxu0 0.0
    %50 = vmatpush1.msra.mxu0 0.0
    %51 = vmatprep.subr.mxu0 0.0
    %52 = vmatpush1.msra.mxu0 0.0
    %53 = vmatprep.subr.mxu0 0.0
    %54 = vmatpush1.msra.mxu0 0.0
    %55 = vmatprep.subr.mxu0 0.0
    %56 = vmatpush1.msra.mxu0 0.0
    %57 = vmatprep.subr.mxu0 0.0
    %58 = vmatpush1.msra.mxu0 0.0
    %59 = vmatprep.subr.mxu0 0.0
    %60 = vmatpush1.msra.mxu0 0.0
    %61 = vmatprep.subr.mxu0 0.0
    %62 = vmatpush1.msra.mxu0 0.0
    %63 = vmatprep.subr.mxu0 0.0
    %64 = vmatpush1.msra.mxu0 0.0
    %65 = vmatprep.subr.mxu0 0.0
    %66 = vmatpush1.msra.mxu0 0.0
    %67 = vmatprep.subr.mxu0 0.0
    %68 = vmatpush1.msra.mxu0 0.0
    %69 = vmatprep.subr.mxu0 0.0
    %70 = vmatpush1.msra.mxu0 %v29
    %71 = vmatprep.subr.mxu0 0.0
    %72 = vmatpush1.msra.mxu0 %v28
    %73 = vmatprep.subr.mxu0 0.0
    %74 = vmatpush2.msra.mxu0 0.0
    %75 = vmatprep.subr.mxu0 0.0
    %76 = vmatpush2.msra.mxu0 0.0
    %77 = vmatprep.subr.mxu0 0.0
    %78 = vmatpush2.msra.mxu0 0.0
    %79 = vmatprep.subr.mxu0 0.0
    %80 = vmatpush2.msra.mxu0 0.0
    %81 = vmatprep.subr.mxu0 0.0
    %82 = vmatpush2.msra.mxu0 0.0
    %83 = vmatprep.subr.mxu0 0.0
    %84 = vmatpush2.msra.mxu0 0.0
    %85 = vmatprep.subr.mxu0 0.0
    %86 = vmatpush2.msra.mxu0 0.0
    %87 = vmatprep.subr.mxu0 0.0
    %88 = vmatpush2.msra.mxu0 0.0
    %89 = vmatprep.subr.mxu0 0.0
    %90 = vmatpush2.msra.mxu0 0.0
    %91 = vmatprep.subr.mxu0 0.0
    %92 = vmatpush2.msra.mxu0 0.0
    %93 = vmatprep.subr.mxu0 0.0
    %94 = vmatpush2.msra.mxu0 0.0
    %95 = vmatprep.subr.mxu0 0.0
    %96 = vmatpush2.msra.mxu0 0.0
    %97 = vmatprep.subr.mxu0 0.0
    %98 = vmatpush2.msra.mxu0 0.0
    %99 = vmatprep.subr.mxu0 0.0
    %100 = vmatpush2.msra.mxu0 0.0
    %101 = vmatprep.subr.mxu0 0.0
    %102 = vmatpush2.msra.mxu0 0.0
    %103 = vmatprep.subr.mxu0 0.0
    %104 = vmatpush2.msra.mxu0 0.0
    %105 = vmatprep.mubr.f32.mxu0 0.0
    %106 = vmatmul.mubr.f32.gmra.mxu0 %v39
    %v107 = vpop.f32.mrf.mxu0
    %v108 = vadd.f32 %v35, %v107
    %v109 = vpop.f32.mrf.mxu0
    %110 = vdwg.mxu0
    %v111 = vmax.f32 %v108, 0.0
    %v112 = vld [vmem:[%s3] sm:$0xff]
    %v113 = vld [vmem:[%s3 + $0x8] sm:$0xff]
    %v114 = vld [vmem:[%s3 + $0x10] sm:$0xff]
    %v115 = vld [vmem:[%s3 + $0x18] sm:$0xff]
    %v116 = vld [vmem:[%s3 + $0x20] sm:$0xff]
    %v117 = vld [vmem:[%s3 + $0x28] sm:$0xff]
    %v118 = vld [vmem:[%s3 + $0x30] sm:$0xff]
    %v119 = vld [vmem:[%s3 + $0x38] sm:$0xff]
    %v120 = vld [vmem:[%s3 + $0x40] sm:$0xff]
    %v121 = vld [vmem:[%s3 + $0x48] sm:$0xff]
    %v122 = vld [vmem:[%s3 + $0x50] sm:$0xff]
    %v123 = vld [vmem:[%s3 + $0x58] sm:$0xff]
    %v124 = vld [vmem:[%s3 + $0x60] sm:$0xff]
    %v125 = vld [vmem:[%s3 + $0x68] sm:$0xff]
    %v126 = vld [vmem:[%s3 + $0x70] sm:$0xff]
    %v127 = vld [vmem:[%s3 + $0x78] sm:$0xff]
    %v128 = vld [vmem:[%s4] sm:$0x1]
    %v130 = vlaneseq
    %v131 = vshrl.u32 %v130, 7
    %v132 = vsub.s32 0, %v131
    %v133 = vrot.slane %v128, %v132
    %135 = vmatprep.subr.mxu0 0.0
    %136 = vmatpush1.msra.mxu0 %v127
    %137 = vmatprep.subr.mxu0 0.0
    %138 = vmatpush1.msra.mxu0 %v126
    %139 = vmatprep.subr.mxu0 0.0
    %140 = vmatpush1.msra.mxu0 %v125
    %141 = vmatprep.subr.mxu0 0.0
    %142 = vmatpush1.msra.mxu0 %v124
    %143 = vmatprep.subr.mxu0 0.0
    %144 = vmatpush1.msra.mxu0 %v123
    %145 = vmatprep.subr.mxu0 0.0
    %146 = vmatpush1.msra.mxu0 %v122
    %147 = vmatprep.subr.mxu0 0.0
    %148 = vmatpush1.msra.mxu0 %v121
    %149 = vmatprep.subr.mxu0 0.0
    %150 = vmatpush1.msra.mxu0 %v120
    %151 = vmatprep.subr.mxu0 0.0
    %152 = vmatpush1.msra.mxu0 %v119
    %153 = vmatprep.subr.mxu0 0.0
    %154 = vmatpush1.msra.mxu0 %v118
    %155 = vmatprep.subr.mxu0 0.0
    %156 = vmatpush1.msra.mxu0 %v117
    %157 = vmatprep.subr.mxu0 0.0
    %158 = vmatpush1.msra.mxu0 %v116
    %159 = vmatprep.subr.mxu0 0.0
    %160 = vmatpush1.msra.mxu0 %v115
    %161 = vmatprep.subr.mxu0 0.0
    %162 = vmatpush1.msra.mxu0 %v114
    %163 = vmatprep.subr.mxu0 0.0
    %164 = vmatpush1.msra.mxu0 %v113
    %165 = vmatprep.subr.mxu0 0.0
    %166 = vmatpush1.msra.mxu0 %v112
    %167 = vmatprep.subr.mxu0 0.0
    %168 = vmatpush2.msra.mxu0 0.0
    %169 = vmatprep.subr.mxu0 0.0
    %170 = vmatpush2.msra.mxu0 0.0
    %171 = vmatprep.subr.mxu0 0.0
    %172 = vmatpush2.msra.mxu0 0.0
    %173 = vmatprep.subr.mxu0 0.0
    %174 = vmatpush2.msra.mxu0 0.0
    %175 = vmatprep.subr.mxu0 0.0
    %176 = vmatpush2.msra.mxu0 0.0
    %177 = vmatprep.subr.mxu0 0.0
    %178 = vmatpush2.msra.mxu0 0.0
    %179 = vmatprep.subr.mxu0 0.0
    %180 = vmatpush2.msra.mxu0 0.0
    %181 = vmatprep.subr.mxu0 0.0
    %182 = vmatpush2.msra.mxu0 0.0
    %183 = vmatprep.subr.mxu0 0.0
    %184 = vmatpush2.msra.mxu0 0.0
    %185 = vmatprep.subr.mxu0 0.0
    %186 = vmatpush2.msra.mxu0 0.0
    %187 = vmatprep.subr.mxu0 0.0
    %188 = vmatpush2.msra.mxu0 0.0
    %189 = vmatprep.subr.mxu0 0.0
    %190 = vmatpush2.msra.mxu0 0.0
    %191 = vmatprep.subr.mxu0 0.0
    %192 = vmatpush2.msra.mxu0 0.0
    %193 = vmatprep.subr.mxu0 0.0
    %194 = vmatpush2.msra.mxu0 0.0
    %195 = vmatprep.subr.mxu0 0.0
    %196 = vmatpush2.msra.mxu0 0.0
    %197 = vmatprep.subr.mxu0 0.0
    %198 = vmatpush2.msra.mxu0 0.0
    %199 = vmatprep.mubr.f32.mxu0 0.0
    %200 = vmatmul.mubr.f32.gmra.mxu0 %v111
    %v201 = vpop.f32.mrf.mxu0
    %v202 = vadd.f32 %v133, %v201
    %v203 = vpop.f32.mrf.mxu0
    %204 = vdwg.mxu0
    %v205 = vmax.f32 %v202, 0.0
    %v206 = vld [vmem:[%s5] sm:$0xff]
    %v207 = vld [vmem:[%s5 + $0x8] sm:$0xff]
    %v208 = vld [vmem:[%s5 + $0x10] sm:$0xff]
    %v209 = vld [vmem:[%s5 + $0x18] sm:$0xff]
    %v210 = vld [vmem:[%s5 + $0x20] sm:$0xff]
    %v211 = vld [vmem:[%s5 + $0x28] sm:$0xff]
    %v212 = vld [vmem:[%s5 + $0x30] sm:$0xff]
    %v213 = vld [vmem:[%s5 + $0x38] sm:$0xff]
    %v214 = vld [vmem:[%s5 + $0x40] sm:$0xff]
    %v215 = vld [vmem:[%s5 + $0x48] sm:$0xff]
    %v216 = vld [vmem:[%s5 + $0x50] sm:$0xff]
    %v217 = vld [vmem:[%s5 + $0x58] sm:$0xff]
    %v218 = vld [vmem:[%s5 + $0x60] sm:$0xff]
    %v219 = vld [vmem:[%s5 + $0x68] sm:$0xff]
    %v220 = vld [vmem:[%s5 + $0x70] sm:$0xff]
    %v221 = vld [vmem:[%s5 + $0x78] sm:$0xff]
    %v222 = vld [vmem:[%s6] sm:$0x1]
    %v224 = vlaneseq
    %v225 = vshrl.u32 %v224, 7
    %v226 = vsub.s32 0, %v225
    %v227 = vrot.slane %v222, %v226
    %229 = vmatprep.subr.mxu0 0.0
    %230 = vmatpush1.msra.mxu0 %v221
    %231 = vmatprep.subr.mxu0 0.0
    %232 = vmatpush1.msra.mxu0 %v220
    %233 = vmatprep.subr.mxu0 0.0
    %234 = vmatpush1.msra.mxu0 %v219
    %235 = vmatprep.subr.mxu0 0.0
    %236 = vmatpush1.msra.mxu0 %v218
    %237 = vmatprep.subr.mxu0 0.0
    %238 = vmatpush1.msra.mxu0 %v217
    %239 = vmatprep.subr.mxu0 0.0
    %240 = vmatpush1.msra.mxu0 %v216
    %241 = vmatprep.subr.mxu0 0.0
    %242 = vmatpush1.msra.mxu0 %v215
    %243 = vmatprep.subr.mxu0 0.0
    %244 = vmatpush1.msra.mxu0 %v214
    %245 = vmatprep.subr.mxu0 0.0
    %246 = vmatpush1.msra.mxu0 %v213
    %247 = vmatprep.subr.mxu0 0.0
    %248 = vmatpush1.msra.mxu0 %v212
    %249 = vmatprep.subr.mxu0 0.0
    %250 = vmatpush1.msra.mxu0 %v211
    %251 = vmatprep.subr.mxu0 0.0
    %252 = vmatpush1.msra.mxu0 %v210
    %253 = vmatprep.subr.mxu0 0.0
    %254 = vmatpush1.msra.mxu0 %v209
    %255 = vmatprep.subr.mxu0 0.0
    %256 = vmatpush1.msra.mxu0 %v208
    %257 = vmatprep.subr.mxu0 0.0
    %258 = vmatpush1.msra.mxu0 %v207
    %259 = vmatprep.subr.mxu0 0.0
    %260 = vmatpush1.msra.mxu0 %v206
    %261 = vmatprep.subr.mxu0 0.0
    %262 = vmatpush2.msra.mxu0 0.0
    %263 = vmatprep.subr.mxu0 0.0
    %264 = vmatpush2.msra.mxu0 0.0
    %265 = vmatprep.subr.mxu0 0.0
    %266 = vmatpush2.msra.mxu0 0.0
    %267 = vmatprep.subr.mxu0 0.0
    %268 = vmatpush2.msra.mxu0 0.0
    %269 = vmatprep.subr.mxu0 0.0
    %270 = vmatpush2.msra.mxu0 0.0
    %271 = vmatprep.subr.mxu0 0.0
    %272 = vmatpush2.msra.mxu0 0.0
    %273 = vmatprep.subr.mxu0 0.0
    %274 = vmatpush2.msra.mxu0 0.0
    %275 = vmatprep.subr.mxu0 0.0
    %276 = vmatpush2.msra.mxu0 0.0
    %277 = vmatprep.subr.mxu0 0.0
    %278 = vmatpush2.msra.mxu0 0.0
    %279 = vmatprep.subr.mxu0 0.0
    %280 = vmatpush2.msra.mxu0 0.0
    %281 = vmatprep.subr.mxu0 0.0
    %282 = vmatpush2.msra.mxu0 0.0
    %283 = vmatprep.subr.mxu0 0.0
    %284 = vmatpush2.msra.mxu0 0.0
    %285 = vmatprep.subr.mxu0 0.0
    %286 = vmatpush2.msra.mxu0 0.0
    %287 = vmatprep.subr.mxu0 0.0
    %288 = vmatpush2.msra.mxu0 0.0
    %289 = vmatprep.subr.mxu0 0.0
    %290 = vmatpush2.msra.mxu0 0.0
    %291 = vmatprep.subr.mxu0 0.0
    %292 = vmatpush2.msra.mxu0 0.0
    %293 = vmatprep.mubr.f32.mxu0 0.0
    %294 = vmatmul.mubr.f32.gmra.mxu0 %v205
    %v295 = vpop.f32.mrf.mxu0
    %v296 = vadd.f32 %v227, %v295
    %v297 = vpop.f32.mrf.mxu0
    %298 = vdwg.mxu0
    %vm299 = vcmask 64512
    %300 = vst.msk [vmem:[#allocation2] sm:$0xff] %vm299, %v296
    // Predicated region
    $region30: #{qnetwork_forward.1} parent=1 // pred_check
      _
    $region31: #{qnetwork_forward.1} parent=1 // pred_check_branch
      %302 = sbr.rel (0) target = $region33
    $region32: #{qnetwork_forward.1} parent=1 // pred_region
      %s304 = ssub.s32 128, 128
      %305 = vsyncadd [#allocation3], %s304
      %s307 = sshll.u32 [#allocation2], 4
      %s308 = int_to_ptr.vmem [resolvable:$true] %s307
      %310 = dma.vmem_to_hbm [thread:$0]  %s308, 128, %s7, [#allocation3]
    $region33: #{qnetwork_forward.1} parent=1 // pred_fallthru
      _
    // Predicated region
    $region34: #{qnetwork_forward.1} parent=1 // pred_check
      _
    $region35: #{qnetwork_forward.1} parent=1 // pred_check_branch
      %312 = sbr.rel (0) target = $region37
    $region36: #{qnetwork_forward.1} parent=1 // pred_region
      %313 = dma.done [#allocation3], 128
    $region37: #{qnetwork_forward.1} parent=1 // pred_fallthru
      _
    %314 = vsyncpa [#allocation3], 1

</llo_original>
